<compile_context>
chip_gen: v5e
topology: v5e:2x2
jax: 0.10.0
libtpu: 0.0.40
codegen_flags: <defaults>
</compile_context>

<pallas_src>
import jax
import jax.numpy as jnp
from jax.experimental import pallas as pl
from jax.experimental.pallas import tpu as pltpu


# ---------------- helpers ----------------

def _round_up(x, m):
    return ((x + m - 1) // m) * m


# ---------------- kernel ----------------

def _actnorm_affine_kernel(params_ref, x_ref, z_ref):
    # params_ref: (2, d_eff) f32 — row 0 = scale, row 1 = mu (resident across grid).
    # x_ref/z_ref: (row_tile, d_eff) in the input's native dtype.
    scale = params_ref[0:1, :]
    mu = params_ref[1:2, :]
    z_ref[...] = (x_ref[...].astype(jnp.float32) * scale + mu).astype(z_ref.dtype)


# ---------------- wrapper ----------------

def actnorm_forward(x, v, mu, log_sigma, *, row_tile=None):
    """x: (B, N, D), v: (B,), mu/log_sigma: (1, 1, D).

    Returns (z, log_det) with z: (B, N, D) in x.dtype, log_det: (B,) in f32."""
    B, N, D = x.shape
    orig_dtype = x.dtype
    rows = B * N

    mu1 = mu.reshape(1, D).astype(jnp.float32)
    ls1 = log_sigma.reshape(1, D).astype(jnp.float32)
    scale1 = jnp.exp(ls1)                       # hoisted out of the hot loop

    # Lane-dense folding: fold k consecutive rows into the lane axis so the last
    # dim of every x/z block is a multiple of 128 (unmasked vector stores).
    # Only do it when it costs no padding (rows % k == 0).
    if D < 128 and 128 % D == 0 and rows % (128 // D) == 0:
        k = 128 // D
    else:
        k = 1
    d_eff = k * D
    rows_f = rows // k

    # Metadata-only reshape; no dtype change, no copy.
    x2 = x.reshape(rows_f, d_eff)

    # Fused resident parameter operand: row 0 = scale, row 1 = mu (both tiled to d_eff).
    params = jnp.concatenate(
        [jnp.tile(scale1, (1, k)), jnp.tile(mu1, (1, k))], axis=0)   # (2, d_eff) f32

    itemsize = jnp.dtype(orig_dtype).itemsize
    sublane = max(8, 32 // itemsize)            # 8 f32, 16 bf16, 32 int8/fp8

    if row_tile is None:
        # Target ~16 MiB of live double-buffered VMEM for x+z (fits the 32 MiB scoped
        # limit on every generation), while amortizing the ~0.35 us/step overhead.
        budget_bytes = 16 * 1024 * 1024
        bytes_per_row = 2 * 2 * d_eff * itemsize        # (in+out) * double-buffer
        cand = max(sublane, budget_bytes // bytes_per_row)
        # Keep at least ~8 grid steps so v7x's 2 TensorCores both get work and the
        # pipeline actually overlaps DMA with compute.
        min_steps = 8
        step_cap = max(sublane, _round_up(pl.cdiv(rows_f, min_steps), sublane))
        cand = min(cand, step_cap)
        row_tile = max(sublane, (cand // sublane) * sublane)

    grid = (pl.cdiv(rows_f, row_tile),)         # ragged last block handled by Pallas

    z2 = pl.pallas_call(
        _actnorm_affine_kernel,
        out_shape=jax.ShapeDtypeStruct((rows_f, d_eff), orig_dtype),
        grid_spec=pltpu.PrefetchScalarGridSpec(
            num_scalar_prefetch=0,
            grid=grid,
            in_specs=[
                pl.BlockSpec((2, d_eff), lambda i: (0, 0)),          # scale+mu (resident)
                pl.BlockSpec((row_tile, d_eff), lambda i: (i, 0)),   # x rows
            ],
            out_specs=pl.BlockSpec((row_tile, d_eff), lambda i: (i, 0)),
        ),
        compiler_params=pltpu.CompilerParams(
            dimension_semantics=("parallel",),          # lets v7x shard rows over 2 TCs
            vmem_limit_bytes=32 * 1024 * 1024,
        ),
    )(params, x2)

    # Metadata-only reshape back to (B, N, D); no pads or slices to undo.
    z = z2.reshape(B, N, D)

    # log_det: D-element reduction + B multiplies — plain JAX, no kernel launch.
    log_det = jnp.sum(ls1) * v.astype(jnp.float32)

    return z, log_det


# ---------------- demo ----------------

if __name__ == "__main__":
    B, N, D = 2, 8, 32  # batch, sequence/nodes, feature dim

    key = jax.random.PRNGKey(0)
    kx, kv, kmu, kls = jax.random.split(key, 4)

    x = jax.random.normal(kx, (B, N, D), dtype=jnp.float32)
    v = jax.random.uniform(kv, (B,), dtype=jnp.float32, minval=1.0, maxval=5.0)

    # Deterministic (non-trivial) parameter init; shapes match nn.Parameter (1, 1, dim).
    mu = 0.1 * jax.random.normal(kmu, (1, 1, D), dtype=jnp.float32)
    log_sigma = 0.1 * jax.random.normal(kls, (1, 1, D), dtype=jnp.float32)

    z, log_det = actnorm_forward(x, v, mu, log_sigma)
    jax.block_until_ready((z, log_det))

    # Reference check (plain JAX, mirrors PyTorch forward).
    z_ref = x * jnp.exp(log_sigma) + mu
    ld_ref = jnp.sum(log_sigma) * v
    assert z.shape == (B, N, D) and z.dtype == x.dtype and log_det.shape == (B,)
    assert jnp.allclose(z, z_ref, atol=1e-5, rtol=1e-5)
    assert jnp.allclose(log_det, ld_ref, atol=1e-5, rtol=1e-5)

    print("KERNEL_OK")
</pallas_src>

<mosaic_0001>
module attributes {stable_mosaic.version = 11 : i64} {
  func.func @_actnorm_affine_kernel(%arg0: i32, %arg1: memref<2x128xf32, #tpu.memory_space<vmem>>, %arg2: memref<8x128xf32, #tpu.memory_space<vmem>>, %arg3: memref<8x128xf32, #tpu.memory_space<vmem>>) attributes {dimension_semantics = [#tpu.dimension_semantics<parallel>], iteration_bounds = array<i64: 1>, scalar_prefetch = 0 : i64, scratch_operands = 0 : i64, tpu.core_type = #tpu.core_type<tc>, window_params = [{pipeline_mode = #tpu.pipeline_mode<synchronous>, transform_indices = @transform_0, window_bounds = array<i64: 2, 128>}, {transform_indices = @transform_1, window_bounds = array<i64: 8, 128>}, {transform_indices = @transform_2, window_bounds = array<i64: 8, 128>}]} {
    %c0 = arith.constant 0 : index
    %c0_0 = arith.constant 0 : index
    %0 = vector.load %arg1[%c0, %c0_0] : memref<2x128xf32, #tpu.memory_space<vmem>>, vector<1x128xf32>
    %c1 = arith.constant 1 : index
    %c0_1 = arith.constant 0 : index
    %1 = vector.load %arg1[%c1, %c0_1] : memref<2x128xf32, #tpu.memory_space<vmem>>, vector<1x128xf32>
    %c0_2 = arith.constant 0 : index
    %c0_3 = arith.constant 0 : index
    %2 = vector.load %arg2[%c0_2, %c0_3] : memref<8x128xf32, #tpu.memory_space<vmem>>, vector<8x128xf32>
    %3 = vector.broadcast %0 : vector<1x128xf32> to vector<8x128xf32>
    %4 = arith.mulf %2, %3 : vector<8x128xf32>
    %5 = vector.broadcast %1 : vector<1x128xf32> to vector<8x128xf32>
    %6 = arith.addf %4, %5 : vector<8x128xf32>
    %c0_4 = arith.constant 0 : index
    %c0_5 = arith.constant 0 : index
    %7 = vector.load %arg3[%c0_4, %c0_5] : memref<8x128xf32, #tpu.memory_space<vmem>>, vector<8x128xf32>
    tpu.vector_store %arg3[%c0_4, %c0_5], %6 {strides = array<i32>} : memref<8x128xf32, #tpu.memory_space<vmem>>, vector<8x128xf32>,
    return
  }
  func.func @transform_0(%arg0: i32) -> (i32, i32) {
    %c0_i32 = arith.constant 0 : i32
    %c0_i32_0 = arith.constant 0 : i32
    %c0_i32_1 = arith.constant 0 : i32
    return %c0_i32, %c0_i32_0 : i32, i32
  }
  func.func @transform_1(%arg0: i32) -> (i32, i32) {
    %c0_i32 = arith.constant 0 : i32
    %c0_i32_0 = arith.constant 0 : i32
    return %arg0, %c0_i32 : i32, i32
  }
  func.func @transform_2(%arg0: i32) -> (i32, i32) {
    %c0_i32 = arith.constant 0 : i32
    %c0_i32_0 = arith.constant 0 : i32
    return %arg0, %c0_i32 : i32, i32
  }
}

</mosaic_0001>

<llo_original>
// kernel: tpu_custom_call.1
$region0: #{tpu_custom_call.1}
  #allocation0 [shape = 'u32[]', space=smem, size = 0x4, offset = 0x4, fixed_abs, tag = 'smem constant byte address 0x4 - core index']
  #allocation1 [shape = 'u32[72,128]{1,0:T(1,128)}', space=vmem, size = 0x9000, scoped, tag = 'internal scratch']
  %s0 = inlined_call_operand.hbm [shape: f32[2,128], index: 0, kind: input, shape index: {}]
  %s1 = inlined_call_operand.hbm [shape: f32[4,128], index: 1, kind: input, shape index: {}]
  %s2 = inlined_call_operand.hbm [shape: f32[4,128], index: 2, kind: output, shape index: {}]
  %s3 = sld [smem:[#allocation0]]
  $region26: #{tpu_custom_call.1} parent=0
    _
  %s5 = ssub.s32 1, %s3
  %s6 = scalar_select 0, %s5, %s3
  $region1: #{tpu_custom_call.1} parent=0
    #allocation2 [shape = 'u8[1024]{0}', space=vmem, size = 0x400, scoped, tag = 'input window, operand 0, single buffered']
    #allocation3 [shape = 's32[1]{0}', space=sflag, size = 0x4, scoped, tag = 'scoped memory for tpu_custom_call.1']
    #allocation4 [shape = 's32[1]{0}', space=sflag, size = 0x4, scoped, tag = 'scoped memory for tpu_custom_call.1']
    #allocation5 [shape = 'u8[4096]{0}', space=vmem, size = 0x1000, scoped, tag = 'input window, operand 1, single buffered']
    #allocation6 [shape = 's32[1]{0}', space=sflag, size = 0x4, scoped, tag = 'scoped memory for tpu_custom_call.1']
    #allocation7 [shape = 'u8[4096]{0}', space=vmem, size = 0x1000, scoped, tag = 'output window, operand 0, single buffered']
    %7 = vsyncpa [#allocation3], 0
    %8 = vsyncpa [#allocation6], 0
    %9 = vsyncpa [#allocation4], 0
    // Predicated region
    $region2: #{tpu_custom_call.1} parent=1 // pred_check
      _
    $region3: #{tpu_custom_call.1} parent=1 // pred_check_branch
      %11 = sbr.rel (0) target = $region5
    $region4: #{tpu_custom_call.1} parent=1 // pred_region
      %13 = vsyncadd [#allocation3], 0
      %s15 = sshll.u32 %s0, 4
      %s16 = int_to_ptr.hbm [resolvable:$true] %s15
      %s17 = sshll.u32 [#allocation2], 4
      %s18 = int_to_ptr.vmem [resolvable:$true] %s17
      %20 = dma.hbm_to_vmem [thread:$0]  %s16, 32, %s18, [#allocation3]
    $region5: #{tpu_custom_call.1} parent=1 // pred_fallthru
      _
    // Predicated region
    $region6: #{tpu_custom_call.1} parent=1 // pred_check
      _
    $region7: #{tpu_custom_call.1} parent=1 // pred_check_branch
      %22 = sbr.rel (0) target = $region9
    $region8: #{tpu_custom_call.1} parent=1 // pred_region
      %24 = vsyncadd [#allocation6], 64
      %s25 = sshll.u32 %s1, 4
      %s26 = int_to_ptr.hbm [resolvable:$true] %s25
      %s27 = sshll.u32 [#allocation5], 4
      %s28 = int_to_ptr.vmem [resolvable:$true] %s27
      %33 = dma.hbm_to_vmem [thread:$0]  %s26, 64, %s28, [#allocation6], 64, 64, 4
    $region9: #{tpu_custom_call.1} parent=1 // pred_fallthru
      _
    // Predicated region
    $region10: #{tpu_custom_call.1} parent=1 // pred_check
      _
    $region11: #{tpu_custom_call.1} parent=1 // pred_check_branch
      %35 = sbr.rel (0) target = $region13
    $region12: #{tpu_custom_call.1} parent=1 // pred_region
      %37 = dma.done [#allocation3], 32
    $region13: #{tpu_custom_call.1} parent=1 // pred_fallthru
      _
    // Predicated region
    $region14: #{tpu_custom_call.1} parent=1 // pred_check
      _
    $region15: #{tpu_custom_call.1} parent=1 // pred_check_branch
      %39 = sbr.rel (0) target = $region17
    $region16: #{tpu_custom_call.1} parent=1 // pred_region
      %41 = dma.done [#allocation6], 128
    $region17: #{tpu_custom_call.1} parent=1 // pred_fallthru
      _
    %v42 = vld [vmem:[#allocation2] sm:$0x1]
    %v43 = vld [vmem:[#allocation2 + $0x1] sm:$0x1]
    %v44 = vld [vmem:[#allocation5] sm:$0xff]
    %v45 = vperm.slane %v42, 0
    %v46 = vmul.f32 %v44, %v45
    %v47 = vperm.slane %v43, 0
    %v48 = vadd.f32 %v46, %v47
    %49 = vst [vmem:[#allocation7] sm:$0xff] %v48
    // Predicated region
    $region18: #{tpu_custom_call.1} parent=1 // pred_check
      _
    $region19: #{tpu_custom_call.1} parent=1 // pred_check_branch
      %51 = sbr.rel (0) target = $region21
    $region20: #{tpu_custom_call.1} parent=1 // pred_region
      %53 = vsyncadd [#allocation4], 64
      %s54 = sshll.u32 [#allocation7], 4
      %s55 = int_to_ptr.vmem [resolvable:$true] %s54
      %s56 = sshll.u32 %s2, 4
      %s57 = int_to_ptr.hbm [resolvable:$true] %s56
      %62 = dma.vmem_to_hbm [thread:$0]  %s55, 64, %s57, [#allocation4], 64, 64, 4
    $region21: #{tpu_custom_call.1} parent=1 // pred_fallthru
      _
    // Predicated region
    $region22: #{tpu_custom_call.1} parent=1 // pred_check
      _
    $region23: #{tpu_custom_call.1} parent=1 // pred_check_branch
      %64 = sbr.rel (0) target = $region25
    $region24: #{tpu_custom_call.1} parent=1 // pred_region
      %66 = dma.done [#allocation4], 128
    $region25: #{tpu_custom_call.1} parent=1 // pred_fallthru
      _
    %67 = vsyncpa [#allocation3], 1
    %68 = vsyncpa [#allocation6], 1
    %69 = vsyncpa [#allocation4], 1

</llo_original>
